<compile_context>
chip_gen: v5e
topology: v5e:2x2
jax: 0.10.0
libtpu: 0.0.40
codegen_flags: <defaults>
</compile_context>

<pallas_src>
import functools

import numpy as np
import jax
import jax.numpy as jnp
from jax.experimental import pallas as pl
from jax.experimental.pallas import tpu as pltpu


# --------------------------------------------------------------------------- #
# Kernel
# --------------------------------------------------------------------------- #
def _decoder_mlp_kernel(num_inputs, compute_dtype,
                        x_ref, w0_ref, b0_ref, w1_ref, b1_ref,
                        wh_ref, bh_ref, out_ref):
    # On-chip cast of the activations (no-op when compute_dtype == f32).
    x = x_ref[...].astype(compute_dtype)

    # ---- trunk: two Linear+ReLU layers -------------------------------------
    # MXU matmuls accumulate in f32; all post-matmul elementwise work
    # (bias add, relu, clamp) stays f32 on the VPU.
    h = jnp.dot(x, w0_ref[...], preferred_element_type=jnp.float32)
    h = jnp.maximum(h + b0_ref[...], 0.0)

    h = jnp.dot(h.astype(compute_dtype), w1_ref[...],
                preferred_element_type=jnp.float32)
    h = jnp.maximum(h + b1_ref[...], 0.0)

    # ---- fused heads: [x_mean | x_logvar] in one matmul ---------------------
    y = jnp.dot(h.astype(compute_dtype), wh_ref[...],
                preferred_element_type=jnp.float32)
    y = y + bh_ref[...]

    # Hardtanh(-6, -2) only on the logvar lanes (lane index >= num_inputs).
    lane = jax.lax.broadcasted_iota(jnp.int32, y.shape, dimension=1)
    y = jnp.where(lane >= num_inputs, jnp.clip(y, -6.0, -2.0), y)

    # Single full-block store: mean in the first NI lanes, logvar in the last
    # NI lanes == torch.cat((x_mean, x_logvar), -1).
    out_ref[...] = y.astype(out_ref.dtype)


# --------------------------------------------------------------------------- #
# Wrapper helpers
# --------------------------------------------------------------------------- #
def prepare_params(params, *, compute_dtype=None):
    """One-time parameter prep: fuse the mean/logvar heads and cast weights.

    Keeping this out of the per-call path avoids an extra full HBM pass over
    the weights on every forward.
    """
    w0, b0, w1, b1, wm, bm, wv, bv = params
    H = int(w0.shape[1])
    if compute_dtype is None:
        # bf16 MXU operands only pay off once the matmuls are big enough to be
        # MXU-bound; below that they just add VPU pack/unpack work (and v5e has
        # no bf16 VPU at all).
        compute_dtype = jnp.bfloat16 if H >= 512 else jnp.float32

    wh = jnp.concatenate([wm, wv], axis=1)                          # (H, 2*NI)
    bh = jnp.concatenate([bm.reshape(1, -1), bv.reshape(1, -1)], axis=1)

    return {
        "w0": w0.astype(compute_dtype),
        "b0": b0.reshape(1, -1).astype(jnp.float32),
        "w1": w1.astype(compute_dtype),
        "b1": b1.reshape(1, -1).astype(jnp.float32),
        "wh": wh.astype(compute_dtype),
        "bh": bh.astype(jnp.float32),
        "num_inputs": int(wm.shape[1]),
        "compute_dtype": compute_dtype,
    }


def _pick_block_b(B):
    """Largest divisor of B that is a multiple of 8 and <= cap.

    Cap is 1024 (amortizes per-grid-step overhead; a 1024-row f32 x/out tile is
    only a few tens of KB here).  For B >= 64 the cap is also B // 2 so the
    'parallel' batch axis has at least two steps for v7x megacore sharding.
    """
    cap = min(1024, B)
    if B >= 64:
        cap = min(cap, B // 2)
    for cand in range(cap - cap % 8, 7, -8):
        if B % cand == 0:
            return cand
    return B  # tiny / odd batches: single full-batch block


def _vmem_limit_bytes(block_b, L, H, NI, compute_dtype):
    cs = np.dtype(compute_dtype).itemsize
    weights = (L * H + H * H + H * 2 * NI) * cs + (2 * H + 2 * NI) * 4
    io = 2 * block_b * (L + 2 * NI) * 4        # double-buffered x / out tiles
    need = 2 * weights + io                    # worst case: weights 2-buffered
    try:
        phys = pltpu.get_tpu_info().vmem_capacity_bytes
    except Exception:
        phys = 64 << 20                        # conservative (v7x per-TC)
    cap = int(phys * 0.9)
    # v5e's default scoped VMEM is only 16 MiB; raise it, but stay well under
    # physical capacity.
    return int(min(cap, max(32 << 20, 2 * need)))


def _build_call(B, L, H, NI, block_b, compute_dtype, out_dtype,
                single_buffer_weights):
    kernel = functools.partial(_decoder_mlp_kernel, NI, compute_dtype)

    def const_spec(shape):
        # Grid-invariant operand: same block every grid step.
        if single_buffer_weights:
            return pl.BlockSpec(shape, lambda i: (0, 0),
                                pipeline_mode=pl.Buffered(1))
        return pl.BlockSpec(shape, lambda i: (0, 0))

    grid_spec = pltpu.PrefetchScalarGridSpec(
        num_scalar_prefetch=0,
        grid=(B // block_b,),
        in_specs=[
            pl.BlockSpec((block_b, L), lambda i: (i, 0)),      # x tile (batch)
            const_spec((L, H)), const_spec((1, H)),            # layer 0
            const_spec((H, H)), const_spec((1, H)),            # layer 1
            const_spec((H, 2 * NI)), const_spec((1, 2 * NI)),  # fused heads
        ],
        out_specs=pl.BlockSpec((block_b, 2 * NI), lambda i: (i, 0)),
    )

    # Advisory cost hint for the XLA scheduler.
    wbytes = np.dtype(compute_dtype).itemsize
    flops = 2 * B * (L * H + H * H + H * 2 * NI)
    bytes_accessed = (B * L * 4
                      + (L * H + H * H + H * 2 * NI) * wbytes
                      + (2 * H + 2 * NI) * 4
                      + B * 2 * NI * np.dtype(out_dtype).itemsize)
    cost = pl.CostEstimate(flops=flops, transcendentals=0,
                           bytes_accessed=bytes_accessed)

    return pl.pallas_call(
        kernel,
        out_shape=jax.ShapeDtypeStruct((B, 2 * NI), out_dtype),
        grid_spec=grid_spec,
        compiler_params=pltpu.CompilerParams(
            dimension_semantics=("parallel",),
            vmem_limit_bytes=_vmem_limit_bytes(block_b, L, H, NI,
                                               compute_dtype),
        ),
        cost_estimate=cost,
    )


def decoder_mlp_pallas(x, prepared, *, block_b=None):
    """Run DecoderMLP forward.  x: (B, num_latent) f32 -> (B, 2*num_inputs)."""
    B, L = x.shape
    H = int(prepared["w0"].shape[1])
    NI = prepared["num_inputs"]
    compute_dtype = prepared["compute_dtype"]

    if block_b is None:
        block_b = _pick_block_b(B)
    assert B % block_b == 0, (B, block_b)

    args = (x, prepared["w0"], prepared["b0"], prepared["w1"], prepared["b1"],
            prepared["wh"], prepared["bh"])

    try:
        fn = _build_call(B, L, H, NI, block_b, compute_dtype, x.dtype,
                         single_buffer_weights=True)
        return fn(*args)
    except Exception:
        # pipeline_mode=pl.Buffered(1) not accepted by this jax/Mosaic build:
        # fall back to default double-buffering (identical semantics).
        fn = _build_call(B, L, H, NI, block_b, compute_dtype, x.dtype,
                         single_buffer_weights=False)
        return fn(*args)


# --------------------------------------------------------------------------- #
# Reference & init
# --------------------------------------------------------------------------- #
def decoder_mlp_reference(x, params):
    """Pure-JAX f32 reference matching the PyTorch forward."""
    w0, b0, w1, b1, wm, bm, wv, bv = params
    h = jnp.maximum(x @ w0 + b0, 0.0)
    h = jnp.maximum(h @ w1 + b1, 0.0)
    x_mean = h @ wm + bm
    x_logvar = jnp.clip(h @ wv + bv, -6.0, -2.0)
    return jnp.concatenate([x_mean, x_logvar], axis=-1)


def init_params(key, num_inputs, num_latent, num_hidden):
    """Deterministic synthetic init.  Weights stored as (in_features, out_features)."""
    keys = jax.random.split(key, 8)

    def lin(kw, kb, fan_in, fan_out):
        bound = 1.0 / jnp.sqrt(fan_in)
        w = jax.random.uniform(kw, (fan_in, fan_out), jnp.float32, -bound, bound)
        b = jax.random.uniform(kb, (1, fan_out), jnp.float32, -bound, bound)
        return w, b

    w0, b0 = lin(keys[0], keys[1], num_latent, num_hidden)
    w1, b1 = lin(keys[2], keys[3], num_hidden, num_hidden)
    wm, bm = lin(keys[4], keys[5], num_hidden, num_inputs)
    wv, bv = lin(keys[6], keys[7], num_hidden, num_inputs)
    return (w0, b0, w1, b1, wm, bm, wv, bv)


if __name__ == "__main__":
    # Small shapes consistent with the module: DecoderMLP(num_inputs=4,
    # num_latent=4, num_hidden=32, lik='gaussian', num_layers=1), batch=16.
    B, NUM_LATENT, NUM_HIDDEN, NUM_INPUTS = 16, 4, 32, 4

    key = jax.random.PRNGKey(0)
    k_x, k_p = jax.random.split(key)
    x = jax.random.normal(k_x, (B, NUM_LATENT), dtype=jnp.float32)
    params = init_params(k_p, NUM_INPUTS, NUM_LATENT, NUM_HIDDEN)

    prepared = prepare_params(params)      # one-time head fusion + weight cast
    out = decoder_mlp_pallas(x, prepared)
    out = jax.block_until_ready(out)
    assert out.shape == (B, 2 * NUM_INPUTS), out.shape

    # At H=32 the kernel computes in f32 end-to-end; the tolerance leaves
    # margin for the TPU MXU's f32 matmul pass-count differing from XLA's
    # default-precision reference matmul.
    ref = decoder_mlp_reference(x, params)
    assert jnp.allclose(out, ref, atol=5e-2, rtol=5e-2), \
        float(jnp.max(jnp.abs(out - ref)))

    print("KERNEL_OK")
</pallas_src>

<mosaic_0001>
module attributes {stable_mosaic.version = 11 : i64} {
  func.func @_decoder_mlp_kernel(%arg0: i32, %arg1: memref<16x4xf32, #tpu.memory_space<vmem>>, %arg2: memref<4x32xf32, #tpu.memory_space<vmem>>, %arg3: memref<1x32xf32, #tpu.memory_space<vmem>>, %arg4: memref<32x32xf32, #tpu.memory_space<vmem>>, %arg5: memref<1x32xf32, #tpu.memory_space<vmem>>, %arg6: memref<32x8xf32, #tpu.memory_space<vmem>>, %arg7: memref<1x8xf32, #tpu.memory_space<vmem>>, %arg8: memref<16x8xf32, #tpu.memory_space<vmem>>) attributes {dimension_semantics = [#tpu.dimension_semantics<parallel>], iteration_bounds = array<i64: 1>, scalar_prefetch = 0 : i64, scratch_operands = 0 : i64, tpu.core_type = #tpu.core_type<tc>, window_params = [{transform_indices = @transform_0, window_bounds = array<i64: 16, 4>}, {pipeline_mode = #tpu.pipeline_mode<synchronous>, transform_indices = @transform_1, window_bounds = array<i64: 4, 32>}, {pipeline_mode = #tpu.pipeline_mode<synchronous>, transform_indices = @transform_2, window_bounds = array<i64: 1, 32>}, {pipeline_mode = #tpu.pipeline_mode<synchronous>, transform_indices = @transform_3, window_bounds = array<i64: 32, 32>}, {pipeline_mode = #tpu.pipeline_mode<synchronous>, transform_indices = @transform_4, window_bounds = array<i64: 1, 32>}, {pipeline_mode = #tpu.pipeline_mode<synchronous>, transform_indices = @transform_5, window_bounds = array<i64: 32, 8>}, {pipeline_mode = #tpu.pipeline_mode<synchronous>, transform_indices = @transform_6, window_bounds = array<i64: 1, 8>}, {transform_indices = @transform_7, window_bounds = array<i64: 16, 8>}]} {
    %c0 = arith.constant 0 : index
    %c0_0 = arith.constant 0 : index
    %0 = vector.load %arg1[%c0, %c0_0] : memref<16x4xf32, #tpu.memory_space<vmem>>, vector<16x4xf32>
    %c0_1 = arith.constant 0 : index
    %c0_2 = arith.constant 0 : index
    %1 = vector.load %arg2[%c0_1, %c0_2] : memref<4x32xf32, #tpu.memory_space<vmem>>, vector<4x32xf32>
    %cst = arith.constant dense<0.000000e+00> : vector<16x32xf32>
    %2 = tpu.matmul %0, %1, %cst {dimension_numbers = #tpu.dot_dimension_numbers<[1], [0], [0], [1], [0, 0, 1, 1], [], []>} : vector<16x4xf32>, vector<4x32xf32>, vector<16x32xf32> -> vector<16x32xf32>
    %c0_3 = arith.constant 0 : index
    %c0_4 = arith.constant 0 : index
    %3 = vector.load %arg3[%c0_3, %c0_4] : memref<1x32xf32, #tpu.memory_space<vmem>>, vector<1x32xf32>
    %4 = vector.broadcast %3 : vector<1x32xf32> to vector<16x32xf32>
    %5 = arith.addf %2, %4 : vector<16x32xf32>
    %cst_5 = arith.constant 0.000000e+00 : f32
    %6 = vector.broadcast %cst_5 : f32 to vector<16x32xf32>
    %7 = arith.maximumf %5, %6 : vector<16x32xf32>
    %c0_6 = arith.constant 0 : index
    %c0_7 = arith.constant 0 : index
    %8 = vector.load %arg4[%c0_6, %c0_7] : memref<32x32xf32, #tpu.memory_space<vmem>>, vector<32x32xf32>
    %cst_8 = arith.constant dense<0.000000e+00> : vector<16x32xf32>
    %9 = tpu.matmul %7, %8, %cst_8 {dimension_numbers = #tpu.dot_dimension_numbers<[1], [0], [0], [1], [0, 0, 1, 1], [], []>} : vector<16x32xf32>, vector<32x32xf32>, vector<16x32xf32> -> vector<16x32xf32>
    %c0_9 = arith.constant 0 : index
    %c0_10 = arith.constant 0 : index
    %10 = vector.load %arg5[%c0_9, %c0_10] : memref<1x32xf32, #tpu.memory_space<vmem>>, vector<1x32xf32>
    %11 = vector.broadcast %10 : vector<1x32xf32> to vector<16x32xf32>
    %12 = arith.addf %9, %11 : vector<16x32xf32>
    %cst_11 = arith.constant 0.000000e+00 : f32
    %13 = vector.broadcast %cst_11 : f32 to vector<16x32xf32>
    %14 = arith.maximumf %12, %13 : vector<16x32xf32>
    %c0_12 = arith.constant 0 : index
    %c0_13 = arith.constant 0 : index
    %15 = vector.load %arg6[%c0_12, %c0_13] : memref<32x8xf32, #tpu.memory_space<vmem>>, vector<32x8xf32>
    %cst_14 = arith.constant dense<0.000000e+00> : vector<16x8xf32>
    %16 = tpu.matmul %14, %15, %cst_14 {dimension_numbers = #tpu.dot_dimension_numbers<[1], [0], [0], [1], [0, 0, 1, 1], [], []>} : vector<16x32xf32>, vector<32x8xf32>, vector<16x8xf32> -> vector<16x8xf32>
    %c0_15 = arith.constant 0 : index
    %c0_16 = arith.constant 0 : index
    %17 = vector.load %arg7[%c0_15, %c0_16] : memref<1x8xf32, #tpu.memory_space<vmem>>, vector<1x8xf32>
    %18 = vector.broadcast %17 : vector<1x8xf32> to vector<16x8xf32>
    %19 = arith.addf %16, %18 : vector<16x8xf32>
    %20 = tpu.iota {dimensions = array<i32: 1>} : vector<16x8xi32>
    %c4_i32 = arith.constant 4 : i32
    %21 = vector.broadcast %c4_i32 : i32 to vector<16x8xi32>
    %22 = arith.cmpi sge, %20, %21 : vector<16x8xi32>
    %cst_17 = arith.constant -6.000000e+00 : f32
    %cst_18 = arith.constant -2.000000e+00 : f32
    %23 = vector.broadcast %cst_17 : f32 to vector<16x8xf32>
    %24 = arith.maximumf %23, %19 : vector<16x8xf32>
    %25 = vector.broadcast %cst_18 : f32 to vector<16x8xf32>
    %26 = arith.minimumf %25, %24 : vector<16x8xf32>
    %27 = arith.select %22, %26, %19 : vector<16x8xi1>, vector<16x8xf32>
    %c0_19 = arith.constant 0 : index
    %c0_20 = arith.constant 0 : index
    %28 = vector.load %arg8[%c0_19, %c0_20] : memref<16x8xf32, #tpu.memory_space<vmem>>, vector<16x8xf32>
    tpu.vector_store %arg8[%c0_19, %c0_20], %27 {strides = array<i32>} : memref<16x8xf32, #tpu.memory_space<vmem>>, vector<16x8xf32>,
    return
  }
  func.func @transform_0(%arg0: i32) -> (i32, i32) {
    %c0_i32 = arith.constant 0 : i32
    %c0_i32_0 = arith.constant 0 : i32
    return %arg0, %c0_i32 : i32, i32
  }
  func.func @transform_1(%arg0: i32) -> (i32, i32) {
    %c0_i32 = arith.constant 0 : i32
    %c0_i32_0 = arith.constant 0 : i32
    %c0_i32_1 = arith.constant 0 : i32
    return %c0_i32, %c0_i32_0 : i32, i32
  }
  func.func @transform_2(%arg0: i32) -> (i32, i32) {
    %c0_i32 = arith.constant 0 : i32
    %c0_i32_0 = arith.constant 0 : i32
    %c0_i32_1 = arith.constant 0 : i32
    return %c0_i32, %c0_i32_0 : i32, i32
  }
  func.func @transform_3(%arg0: i32) -> (i32, i32) {
    %c0_i32 = arith.constant 0 : i32
    %c0_i32_0 = arith.constant 0 : i32
    %c0_i32_1 = arith.constant 0 : i32
    return %c0_i32, %c0_i32_0 : i32, i32
  }
  func.func @transform_4(%arg0: i32) -> (i32, i32) {
    %c0_i32 = arith.constant 0 : i32
    %c0_i32_0 = arith.constant 0 : i32
    %c0_i32_1 = arith.constant 0 : i32
    return %c0_i32, %c0_i32_0 : i32, i32
  }
  func.func @transform_5(%arg0: i32) -> (i32, i32) {
    %c0_i32 = arith.constant 0 : i32
    %c0_i32_0 = arith.constant 0 : i32
    %c0_i32_1 = arith.constant 0 : i32
    return %c0_i32, %c0_i32_0 : i32, i32
  }
  func.func @transform_6(%arg0: i32) -> (i32, i32) {
    %c0_i32 = arith.constant 0 : i32
    %c0_i32_0 = arith.constant 0 : i32
    %c0_i32_1 = arith.constant 0 : i32
    return %c0_i32, %c0_i32_0 : i32, i32
  }
  func.func @transform_7(%arg0: i32) -> (i32, i32) {
    %c0_i32 = arith.constant 0 : i32
    %c0_i32_0 = arith.constant 0 : i32
    return %arg0, %c0_i32 : i32, i32
  }
}

module attributes {stable_mosaic.version = 11 : i64} {
  func.func @_decoder_mlp_kernel(%arg0: i32, %arg1: memref<16x4xf32, #tpu.memory_space<vmem>>, %arg2: memref<4x32xf32, #tpu.memory_space<vmem>>, %arg3: memref<1x32xf32, #tpu.memory_space<vmem>>, %arg4: memref<32x32xf32, #tpu.memory_space<vmem>>, %arg5: memref<1x32xf32, #tpu.memory_space<vmem>>, %arg6: memref<32x8xf32, #tpu.memory_space<vmem>>, %arg7: memref<1x8xf32, #tpu.memory_space<vmem>>, %arg8: memref<16x8xf32, #tpu.memory_space<vmem>>) attributes {dimension_semantics = [#tpu.dimension_semantics<parallel>], iteration_bounds = array<i64: 1>, scalar_prefetch = 0 : i64, scratch_operands = 0 : i64, tpu.core_type = #tpu.core_type<tc>, window_params = [{transform_indices = @transform_0, window_bounds = array<i64: 16, 4>}, {pipeline_mode = #tpu.pipeline_mode<synchronous>, transform_indices = @transform_1, window_bounds = array<i64: 4, 32>}, {pipeline_mode = #tpu.pipeline_mode<synchronous>, transform_indices = @transform_2, window_bounds = array<i64: 1, 32>}, {pipeline_mode = #tpu.pipeline_mode<synchronous>, transform_indices = @transform_3, window_bounds = array<i64: 32, 32>}, {pipeline_mode = #tpu.pipeline_mode<synchronous>, transform_indices = @transform_4, window_bounds = array<i64: 1, 32>}, {pipeline_mode = #tpu.pipeline_mode<synchronous>, transform_indices = @transform_5, window_bounds = array<i64: 32, 8>}, {pipeline_mode = #tpu.pipeline_mode<synchronous>, transform_indices = @transform_6, window_bounds = array<i64: 1, 8>}, {transform_indices = @transform_7, window_bounds = array<i64: 16, 8>}]} {
    %c0 = arith.constant 0 : index
    %c0_0 = arith.constant 0 : index
    %0 = vector.load %arg1[%c0, %c0_0] : memref<16x4xf32, #tpu.memory_space<vmem>>, vector<16x4xf32>
    %c0_1 = arith.constant 0 : index
    %c0_2 = arith.constant 0 : index
    %1 = vector.load %arg2[%c0_1, %c0_2] : memref<4x32xf32, #tpu.memory_space<vmem>>, vector<4x32xf32>
    %cst = arith.constant dense<0.000000e+00> : vector<16x32xf32>
    %2 = tpu.matmul %0, %1, %cst {dimension_numbers = #tpu.dot_dimension_numbers<[1], [0], [0], [1], [0, 0, 1, 1], [], []>} : vector<16x4xf32>, vector<4x32xf32>, vector<16x32xf32> -> vector<16x32xf32>
    %c0_3 = arith.constant 0 : index
    %c0_4 = arith.constant 0 : index
    %3 = vector.load %arg3[%c0_3, %c0_4] : memref<1x32xf32, #tpu.memory_space<vmem>>, vector<1x32xf32>
    %4 = vector.broadcast %3 : vector<1x32xf32> to vector<16x32xf32>
    %5 = arith.addf %2, %4 : vector<16x32xf32>
    %cst_5 = arith.constant 0.000000e+00 : f32
    %6 = vector.broadcast %cst_5 : f32 to vector<16x32xf32>
    %7 = arith.maximumf %5, %6 : vector<16x32xf32>
    %c0_6 = arith.constant 0 : index
    %c0_7 = arith.constant 0 : index
    %8 = vector.load %arg4[%c0_6, %c0_7] : memref<32x32xf32, #tpu.memory_space<vmem>>, vector<32x32xf32>
    %cst_8 = arith.constant dense<0.000000e+00> : vector<16x32xf32>
    %9 = tpu.matmul %7, %8, %cst_8 {dimension_numbers = #tpu.dot_dimension_numbers<[1], [0], [0], [1], [0, 0, 1, 1], [], []>} : vector<16x32xf32>, vector<32x32xf32>, vector<16x32xf32> -> vector<16x32xf32>
    %c0_9 = arith.constant 0 : index
    %c0_10 = arith.constant 0 : index
    %10 = vector.load %arg5[%c0_9, %c0_10] : memref<1x32xf32, #tpu.memory_space<vmem>>, vector<1x32xf32>
    %11 = vector.broadcast %10 : vector<1x32xf32> to vector<16x32xf32>
    %12 = arith.addf %9, %11 : vector<16x32xf32>
    %cst_11 = arith.constant 0.000000e+00 : f32
    %13 = vector.broadcast %cst_11 : f32 to vector<16x32xf32>
    %14 = arith.maximumf %12, %13 : vector<16x32xf32>
    %c0_12 = arith.constant 0 : index
    %c0_13 = arith.constant 0 : index
    %15 = vector.load %arg6[%c0_12, %c0_13] : memref<32x8xf32, #tpu.memory_space<vmem>>, vector<32x8xf32>
    %cst_14 = arith.constant dense<0.000000e+00> : vector<16x8xf32>
    %16 = tpu.matmul %14, %15, %cst_14 {dimension_numbers = #tpu.dot_dimension_numbers<[1], [0], [0], [1], [0, 0, 1, 1], [], []>} : vector<16x32xf32>, vector<32x8xf32>, vector<16x8xf32> -> vector<16x8xf32>
    %c0_15 = arith.constant 0 : index
    %c0_16 = arith.constant 0 : index
    %17 = vector.load %arg7[%c0_15, %c0_16] : memref<1x8xf32, #tpu.memory_space<vmem>>, vector<1x8xf32>
    %18 = vector.broadcast %17 : vector<1x8xf32> to vector<16x8xf32>
    %19 = arith.addf %16, %18 : vector<16x8xf32>
    %20 = tpu.iota {dimensions = array<i32: 1>} : vector<16x8xi32>
    %c4_i32 = arith.constant 4 : i32
    %21 = vector.broadcast %c4_i32 : i32 to vector<16x8xi32>
    %22 = arith.cmpi sge, %20, %21 : vector<16x8xi32>
    %cst_17 = arith.constant -6.000000e+00 : f32
    %cst_18 = arith.constant -2.000000e+00 : f32
    %23 = vector.broadcast %cst_17 : f32 to vector<16x8xf32>
    %24 = arith.maximumf %23, %19 : vector<16x8xf32>
    %25 = vector.broadcast %cst_18 : f32 to vector<16x8xf32>
    %26 = arith.minimumf %25, %24 : vector<16x8xf32>
    %27 = arith.select %22, %26, %19 : vector<16x8xi1>, vector<16x8xf32>
    %c0_19 = arith.constant 0 : index
    %c0_20 = arith.constant 0 : index
    %28 = vector.load %arg8[%c0_19, %c0_20] : memref<16x8xf32, #tpu.memory_space<vmem>>, vector<16x8xf32>
    tpu.vector_store %arg8[%c0_19, %c0_20], %27 {strides = array<i32>} : memref<16x8xf32, #tpu.memory_space<vmem>>, vector<16x8xf32>,
    return
  }
  func.func @transform_0(%arg0: i32) -> (i32, i32) {
    %c0_i32 = arith.constant 0 : i32
    %c0_i32_0 = arith.constant 0 : i32
    return %arg0, %c0_i32 : i32, i32
  }
  func.func @transform_1(%arg0: i32) -> (i32, i32) {
    %c0_i32 = arith.constant 0 : i32
    %c0_i32_0 = arith.constant 0 : i32
    %c0_i32_1 = arith.constant 0 : i32
    return %c0_i32, %c0_i32_0 : i32, i32
  }
  func.func @transform_2(%arg0: i32) -> (i32, i32) {
    %c0_i32 = arith.constant 0 : i32
    %c0_i32_0 = arith.constant 0 : i32
    %c0_i32_1 = arith.constant 0 : i32
    return %c0_i32, %c0_i32_0 : i32, i32
  }
  func.func @transform_3(%arg0: i32) -> (i32, i32) {
    %c0_i32 = arith.constant 0 : i32
    %c0_i32_0 = arith.constant 0 : i32
    %c0_i32_1 = arith.constant 0 : i32
    return %c0_i32, %c0_i32_0 : i32, i32
  }
  func.func @transform_4(%arg0: i32) -> (i32, i32) {
    %c0_i32 = arith.constant 0 : i32
    %c0_i32_0 = arith.constant 0 : i32
    %c0_i32_1 = arith.constant 0 : i32
    return %c0_i32, %c0_i32_0 : i32, i32
  }
  func.func @transform_5(%arg0: i32) -> (i32, i32) {
    %c0_i32 = arith.constant 0 : i32
    %c0_i32_0 = arith.constant 0 : i32
    %c0_i32_1 = arith.constant 0 : i32
    return %c0_i32, %c0_i32_0 : i32, i32
  }
  func.func @transform_6(%arg0: i32) -> (i32, i32) {
    %c0_i32 = arith.constant 0 : i32
    %c0_i32_0 = arith.constant 0 : i32
    %c0_i32_1 = arith.constant 0 : i32
    return %c0_i32, %c0_i32_0 : i32, i32
  }
  func.func @transform_7(%arg0: i32) -> (i32, i32) {
    %c0_i32 = arith.constant 0 : i32
    %c0_i32_0 = arith.constant 0 : i32
    return %arg0, %c0_i32 : i32, i32
  }
}

</mosaic_0001>

<llo_original>
// kernel: tpu_custom_call.1
$region0: #{tpu_custom_call.1}
  #allocation0 [shape = 'u32[]', space=smem, size = 0x4, offset = 0x4, fixed_abs, tag = 'smem constant byte address 0x4 - core index']
  #allocation1 [shape = 'u32[72,128]{1,0:T(1,128)}', space=vmem, size = 0x9000, scoped, tag = 'internal scratch']
  %s0 = inlined_call_operand.vmem [shape: f32[16,4], index: 0, kind: input, shape index: {}]
  %s1 = inlined_call_operand.vmem [shape: f32[4,32], index: 1, kind: input, shape index: {}]
  %s2 = inlined_call_operand.vmem [shape: f32[1,32], index: 2, kind: input, shape index: {}]
  %s3 = inlined_call_operand.vmem [shape: f32[32,32], index: 3, kind: input, shape index: {}]
  %s4 = inlined_call_operand.vmem [shape: f32[1,32], index: 4, kind: input, shape index: {}]
  %s5 = inlined_call_operand.vmem [shape: f32[32,8], index: 5, kind: input, shape index: {}]
  %s6 = inlined_call_operand.vmem [shape: f32[1,8], index: 6, kind: input, shape index: {}]
  %s7 = inlined_call_operand.vmem [shape: f32[16,8], index: 7, kind: output, shape index: {}]
  %s8 = sld [smem:[#allocation0]]
  $region38: #{tpu_custom_call.1} parent=0
    _
  %s10 = ssub.s32 1, %s8
  %s11 = scalar_select 0, %s10, %s8
  // Predicated region
  $region2: #{tpu_custom_call.1} parent=0 // pred_check
    _
  $region3: #{tpu_custom_call.1} parent=0 // pred_check_branch
    %13 = sbr.rel (0) target = $region5
  $region4: #{tpu_custom_call.1} parent=0 // pred_region
    _
  $region5: #{tpu_custom_call.1} parent=0 // pred_fallthru
    _
  // Predicated region
  $region6: #{tpu_custom_call.1} parent=0 // pred_check
    _
  $region7: #{tpu_custom_call.1} parent=0 // pred_check_branch
    %15 = sbr.rel (0) target = $region9
  $region8: #{tpu_custom_call.1} parent=0 // pred_region
    _
  $region9: #{tpu_custom_call.1} parent=0 // pred_fallthru
    _
  // Predicated region
  $region10: #{tpu_custom_call.1} parent=0 // pred_check
    _
  $region11: #{tpu_custom_call.1} parent=0 // pred_check_branch
    %17 = sbr.rel (0) target = $region13
  $region12: #{tpu_custom_call.1} parent=0 // pred_region
    _
  $region13: #{tpu_custom_call.1} parent=0 // pred_fallthru
    _
  // Predicated region
  $region14: #{tpu_custom_call.1} parent=0 // pred_check
    _
  $region15: #{tpu_custom_call.1} parent=0 // pred_check_branch
    %19 = sbr.rel (0) target = $region17
  $region16: #{tpu_custom_call.1} parent=0 // pred_region
    _
  $region17: #{tpu_custom_call.1} parent=0 // pred_fallthru
    _
  // Predicated region
  $region18: #{tpu_custom_call.1} parent=0 // pred_check
    _
  $region19: #{tpu_custom_call.1} parent=0 // pred_check_branch
    %21 = sbr.rel (0) target = $region21
  $region20: #{tpu_custom_call.1} parent=0 // pred_region
    _
  $region21: #{tpu_custom_call.1} parent=0 // pred_fallthru
    _
  // Predicated region
  $region22: #{tpu_custom_call.1} parent=0 // pred_check
    _
  $region23: #{tpu_custom_call.1} parent=0 // pred_check_branch
    %23 = sbr.rel (0) target = $region25
  $region24: #{tpu_custom_call.1} parent=0 // pred_region
    _
  $region25: #{tpu_custom_call.1} parent=0 // pred_fallthru
    _
  // Predicated region
  $region26: #{tpu_custom_call.1} parent=0 // pred_check
    _
  $region27: #{tpu_custom_call.1} parent=0 // pred_check_branch
    %25 = sbr.rel (0) target = $region29
  $region28: #{tpu_custom_call.1} parent=0 // pred_region
    _
  $region29: #{tpu_custom_call.1} parent=0 // pred_fallthru
    _
  %v26 = vld [vmem:[%s0] sm:$0xff]
  %v27 = vld [vmem:[%s0 + $0x8] sm:$0xff]
  %v28 = vld [vmem:[%s1] sm:$0xf]
  %v29 = vld [vmem:[%s2] sm:$0x1]
  %v31 = vperm.slane %v29, 0
  %vm33 = vcmask 31744
  %v35 = vsel %vm33, %v26, 0
  %v38 = vsel %vm33, %v27, 0
  %vm40 = vcmask 1043456
  %v42 = vsel %vm40, %v28, 0
  %44 = vmatpush.msra.mxu0 0.0
  %45 = vmatpush.msra.mxu0 0.0
  %46 = vmatpush.msra.mxu0 0.0
  %47 = vmatpush.msra.mxu0 0.0
  %48 = vmatpush.msra.mxu0 0.0
  %49 = vmatpush.msra.mxu0 0.0
  %50 = vmatpush.msra.mxu0 0.0
  %51 = vmatpush.msra.mxu0 0.0
  %52 = vmatpush.msra.mxu0 0.0
  %53 = vmatpush.msra.mxu0 0.0
  %54 = vmatpush.msra.mxu0 0.0
  %55 = vmatpush.msra.mxu0 0.0
  %56 = vmatpush.msra.mxu0 0.0
  %57 = vmatpush.msra.mxu0 0.0
  %58 = vmatpush.msra.mxu0 0.0
  %59 = vmatpush.msra.mxu0 %v42
  %60 = vmatmul.f32.gmra.mxu0 %v35
  %v61 = vpop.f32.mrf.mxu0
  %v62 = vadd.f32 %v31, %v61
  %63 = vmatmul.f32.gmra.mxu0 %v38
  %v64 = vpop.f32.mrf.mxu0
  %v65 = vadd.f32 %v31, %v64
  %66 = vdwg.mxu0
  %v67 = vmax.f32 %v62, 0.0
  %v68 = vmax.f32 %v65, 0.0
  %v69 = vld [vmem:[%s3] sm:$0xff]
  %v70 = vld [vmem:[%s3 + $0x8] sm:$0xff]
  %v71 = vld [vmem:[%s3 + $0x10] sm:$0xff]
  %v72 = vld [vmem:[%s3 + $0x18] sm:$0xff]
  %v73 = vld [vmem:[%s4] sm:$0x1]
  %v75 = vperm.slane %v73, 0
  %vm77 = vcmask 261120
  %v79 = vsel %vm77, %v67, 0
  %v82 = vsel %vm77, %v68, 0
  %84 = vmatpush.msra.mxu0 0.0
  %85 = vmatpush.msra.mxu0 0.0
  %86 = vmatpush.msra.mxu0 0.0
  %87 = vmatpush.msra.mxu0 0.0
  %88 = vmatpush.msra.mxu0 0.0
  %89 = vmatpush.msra.mxu0 0.0
  %90 = vmatpush.msra.mxu0 0.0
  %91 = vmatpush.msra.mxu0 0.0
  %92 = vmatpush.msra.mxu0 0.0
  %93 = vmatpush.msra.mxu0 0.0
  %94 = vmatpush.msra.mxu0 0.0
  %95 = vmatpush.msra.mxu0 0.0
  %96 = vmatpush.msra.mxu0 %v72
  %97 = vmatpush.msra.mxu0 %v71
  %98 = vmatpush.msra.mxu0 %v70
  %99 = vmatpush.msra.mxu0 %v69
  %100 = vmatmul.f32.gmra.mxu0 %v79
  %v101 = vpop.f32.mrf.mxu0
  %v102 = vadd.f32 %v75, %v101
  %103 = vmatmul.f32.gmra.mxu0 %v82
  %v104 = vpop.f32.mrf.mxu0
  %v105 = vadd.f32 %v75, %v104
  %106 = vdwg.mxu0
  %v107 = vmax.f32 %v102, 0.0
  %v108 = vmax.f32 %v105, 0.0
  %v109 = vld [vmem:[%s5] sm:$0xff]
  %v110 = vld [vmem:[%s5 + $0x8] sm:$0xff]
  %v111 = vld [vmem:[%s5 + $0x10] sm:$0xff]
  %v112 = vld [vmem:[%s5 + $0x18] sm:$0xff]
  %v113 = vld [vmem:[%s6] sm:$0x1]
  %v115 = vperm.slane %v113, 0
  %v118 = vsel %vm77, %v107, 0
  %v121 = vsel %vm77, %v108, 0
  %123 = vmatpush.msra.mxu0 0.0
  %124 = vmatpush.msra.mxu0 0.0
  %125 = vmatpush.msra.mxu0 0.0
  %126 = vmatpush.msra.mxu0 0.0
  %127 = vmatpush.msra.mxu0 0.0
  %128 = vmatpush.msra.mxu0 0.0
  %129 = vmatpush.msra.mxu0 0.0
  %130 = vmatpush.msra.mxu0 0.0
  %131 = vmatpush.msra.mxu0 0.0
  %132 = vmatpush.msra.mxu0 0.0
  %133 = vmatpush.msra.mxu0 0.0
  %134 = vmatpush.msra.mxu0 0.0
  %135 = vmatpush.msra.mxu0 %v112
  %136 = vmatpush.msra.mxu0 %v111
  %137 = vmatpush.msra.mxu0 %v110
  %138 = vmatpush.msra.mxu0 %v109
  %139 = vmatmul.f32.gmra.mxu0 %v118
  %v140 = vpop.f32.mrf.mxu0
  %v141 = vadd.f32 %v115, %v140
  %142 = vmatmul.f32.gmra.mxu0 %v121
  %v143 = vpop.f32.mrf.mxu0
  %v144 = vadd.f32 %v115, %v143
  %145 = vdwg.mxu0
  %v146 = vlaneseq
  %v147 = vand.u32 %v146, 127
  %vm148 = vcmp.ge.s32.totalorder %v147, 4
  %v149 = vmax.f32 %v141, -6.0
  %v150 = vmax.f32 %v144, -6.0
  %v151 = vmin.f32 %v149, -2.0
  %v152 = vmin.f32 %v150, -2.0
  %v153 = vsel %vm148, %v151, %v141
  %v154 = vsel %vm148, %v152, %v144
  %vm155 = vcmask 64512
  %156 = vst.msk [vmem:[%s7] sm:$0xff] %vm155, %v153
  %157 = vst.msk [vmem:[%s7 + $0x8] sm:$0xff] %vm155, %v154
  // Predicated region
  $region30: #{tpu_custom_call.1} parent=0 // pred_check
    _
  $region31: #{tpu_custom_call.1} parent=0 // pred_check_branch
    %159 = sbr.rel (0) target = $region33
  $region32: #{tpu_custom_call.1} parent=0 // pred_region
    _
  $region33: #{tpu_custom_call.1} parent=0 // pred_fallthru
    _
  // Predicated region
  $region34: #{tpu_custom_call.1} parent=0 // pred_check
    _
  $region35: #{tpu_custom_call.1} parent=0 // pred_check_branch
    %161 = sbr.rel (0) target = $region37
  $region36: #{tpu_custom_call.1} parent=0 // pred_region
    _
  $region37: #{tpu_custom_call.1} parent=0 // pred_fallthru
    _

// kernel: tpu_custom_call.1
$region0: #{tpu_custom_call.1}
  #allocation0 [shape = 'u32[]', space=smem, size = 0x4, offset = 0x4, fixed_abs, tag = 'smem constant byte address 0x4 - core index']
  #allocation1 [shape = 'u32[72,128]{1,0:T(1,128)}', space=vmem, size = 0x9000, scoped, tag = 'internal scratch']
  %s0 = inlined_call_operand.vmem [shape: f32[16,4], index: 0, kind: input, shape index: {}]
  %s1 = inlined_call_operand.vmem [shape: f32[4,32], index: 1, kind: input, shape index: {}]
  %s2 = inlined_call_operand.vmem [shape: f32[1,32], index: 2, kind: input, shape index: {}]
  %s3 = inlined_call_operand.vmem [shape: f32[32,32], index: 3, kind: input, shape index: {}]
  %s4 = inlined_call_operand.vmem [shape: f32[1,32], index: 4, kind: input, shape index: {}]
  %s5 = inlined_call_operand.vmem [shape: f32[32,8], index: 5, kind: input, shape index: {}]
  %s6 = inlined_call_operand.vmem [shape: f32[1,8], index: 6, kind: input, shape index: {}]
  %s7 = inlined_call_operand.vmem [shape: f32[16,8], index: 7, kind: output, shape index: {}]
  %s8 = sld [smem:[#allocation0]]
  $region38: #{tpu_custom_call.1} parent=0
    _
  %s10 = ssub.s32 1, %s8
  %s11 = scalar_select 0, %s10, %s8
  // Predicated region
  $region2: #{tpu_custom_call.1} parent=0 // pred_check
    _
  $region3: #{tpu_custom_call.1} parent=0 // pred_check_branch
    %13 = sbr.rel (0) target = $region5
  $region4: #{tpu_custom_call.1} parent=0 // pred_region
    _
  $region5: #{tpu_custom_call.1} parent=0 // pred_fallthru
    _
  // Predicated region
  $region6: #{tpu_custom_call.1} parent=0 // pred_check
    _
  $region7: #{tpu_custom_call.1} parent=0 // pred_check_branch
    %15 = sbr.rel (0) target = $region9
  $region8: #{tpu_custom_call.1} parent=0 // pred_region
    _
  $region9: #{tpu_custom_call.1} parent=0 // pred_fallthru
    _
  // Predicated region
  $region10: #{tpu_custom_call.1} parent=0 // pred_check
    _
  $region11: #{tpu_custom_call.1} parent=0 // pred_check_branch
    %17 = sbr.rel (0) target = $region13
  $region12: #{tpu_custom_call.1} parent=0 // pred_region
    _
  $region13: #{tpu_custom_call.1} parent=0 // pred_fallthru
    _
  // Predicated region
  $region14: #{tpu_custom_call.1} parent=0 // pred_check
    _
  $region15: #{tpu_custom_call.1} parent=0 // pred_check_branch
    %19 = sbr.rel (0) target = $region17
  $region16: #{tpu_custom_call.1} parent=0 // pred_region
    _
  $region17: #{tpu_custom_call.1} parent=0 // pred_fallthru
    _
  // Predicated region
  $region18: #{tpu_custom_call.1} parent=0 // pred_check
    _
  $region19: #{tpu_custom_call.1} parent=0 // pred_check_branch
    %21 = sbr.rel (0) target = $region21
  $region20: #{tpu_custom_call.1} parent=0 // pred_region
    _
  $region21: #{tpu_custom_call.1} parent=0 // pred_fallthru
    _
  // Predicated region
  $region22: #{tpu_custom_call.1} parent=0 // pred_check
    _
  $region23: #{tpu_custom_call.1} parent=0 // pred_check_branch
    %23 = sbr.rel (0) target = $region25
  $region24: #{tpu_custom_call.1} parent=0 // pred_region
    _
  $region25: #{tpu_custom_call.1} parent=0 // pred_fallthru
    _
  // Predicated region
  $region26: #{tpu_custom_call.1} parent=0 // pred_check
    _
  $region27: #{tpu_custom_call.1} parent=0 // pred_check_branch
    %25 = sbr.rel (0) target = $region29
  $region28: #{tpu_custom_call.1} parent=0 // pred_region
    _
  $region29: #{tpu_custom_call.1} parent=0 // pred_fallthru
    _
  %v26 = vld [vmem:[%s0] sm:$0xff]
  %v27 = vld [vmem:[%s0 + $0x8] sm:$0xff]
  %v28 = vld [vmem:[%s1] sm:$0xf]
  %v29 = vld [vmem:[%s2] sm:$0x1]
  %v31 = vperm.slane %v29, 0
  %vm33 = vcmask 31744
  %v35 = vsel %vm33, %v26, 0
  %v38 = vsel %vm33, %v27, 0
  %vm40 = vcmask 1043456
  %v42 = vsel %vm40, %v28, 0
  %44 = vmatpush.msra.mxu0 0.0
  %45 = vmatpush.msra.mxu0 0.0
  %46 = vmatpush.msra.mxu0 0.0
  %47 = vmatpush.msra.mxu0 0.0
  %48 = vmatpush.msra.mxu0 0.0
  %49 = vmatpush.msra.mxu0 0.0
  %50 = vmatpush.msra.mxu0 0.0
  %51 = vmatpush.msra.mxu0 0.0
  %52 = vmatpush.msra.mxu0 0.0
  %53 = vmatpush.msra.mxu0 0.0
  %54 = vmatpush.msra.mxu0 0.0
  %55 = vmatpush.msra.mxu0 0.0
  %56 = vmatpush.msra.mxu0 0.0
  %57 = vmatpush.msra.mxu0 0.0
  %58 = vmatpush.msra.mxu0 0.0
  %59 = vmatpush.msra.mxu0 %v42
  %60 = vmatmul.f32.gmra.mxu0 %v35
  %v61 = vpop.f32.mrf.mxu0
  %v62 = vadd.f32 %v31, %v61
  %63 = vmatmul.f32.gmra.mxu0 %v38
  %v64 = vpop.f32.mrf.mxu0
  %v65 = vadd.f32 %v31, %v64
  %66 = vdwg.mxu0
  %v67 = vmax.f32 %v62, 0.0
  %v68 = vmax.f32 %v65, 0.0
  %v69 = vld [vmem:[%s3] sm:$0xff]
  %v70 = vld [vmem:[%s3 + $0x8] sm:$0xff]
  %v71 = vld [vmem:[%s3 + $0x10] sm:$0xff]
  %v72 = vld [vmem:[%s3 + $0x18] sm:$0xff]
  %v73 = vld [vmem:[%s4] sm:$0x1]
  %v75 = vperm.slane %v73, 0
  %vm77 = vcmask 261120
  %v79 = vsel %vm77, %v67, 0
  %v82 = vsel %vm77, %v68, 0
  %84 = vmatpush.msra.mxu0 0.0
  %85 = vmatpush.msra.mxu0 0.0
  %86 = vmatpush.msra.mxu0 0.0
  %87 = vmatpush.msra.mxu0 0.0
  %88 = vmatpush.msra.mxu0 0.0
  %89 = vmatpush.msra.mxu0 0.0
  %90 = vmatpush.msra.mxu0 0.0
  %91 = vmatpush.msra.mxu0 0.0
  %92 = vmatpush.msra.mxu0 0.0
  %93 = vmatpush.msra.mxu0 0.0
  %94 = vmatpush.msra.mxu0 0.0
  %95 = vmatpush.msra.mxu0 0.0
  %96 = vmatpush.msra.mxu0 %v72
  %97 = vmatpush.msra.mxu0 %v71
  %98 = vmatpush.msra.mxu0 %v70
  %99 = vmatpush.msra.mxu0 %v69
  %100 = vmatmul.f32.gmra.mxu0 %v79
  %v101 = vpop.f32.mrf.mxu0
  %v102 = vadd.f32 %v75, %v101
  %103 = vmatmul.f32.gmra.mxu0 %v82
  %v104 = vpop.f32.mrf.mxu0
  %v105 = vadd.f32 %v75, %v104
  %106 = vdwg.mxu0
  %v107 = vmax.f32 %v102, 0.0
  %v108 = vmax.f32 %v105, 0.0
  %v109 = vld [vmem:[%s5] sm:$0xff]
  %v110 = vld [vmem:[%s5 + $0x8] sm:$0xff]
  %v111 = vld [vmem:[%s5 + $0x10] sm:$0xff]
  %v112 = vld [vmem:[%s5 + $0x18] sm:$0xff]
  %v113 = vld [vmem:[%s6] sm:$0x1]
  %v115 = vperm.slane %v113, 0
  %v118 = vsel %vm77, %v107, 0
  %v121 = vsel %vm77, %v108, 0
  %123 = vmatpush.msra.mxu0 0.0
  %124 = vmatpush.msra.mxu0 0.0
  %125 = vmatpush.msra.mxu0 0.0
  %126 = vmatpush.msra.mxu0 0.0
  %127 = vmatpush.msra.mxu0 0.0
  %128 = vmatpush.msra.mxu0 0.0
  %129 = vmatpush.msra.mxu0 0.0
  %130 = vmatpush.msra.mxu0 0.0
  %131 = vmatpush.msra.mxu0 0.0
  %132 = vmatpush.msra.mxu0 0.0
  %133 = vmatpush.msra.mxu0 0.0
  %134 = vmatpush.msra.mxu0 0.0
  %135 = vmatpush.msra.mxu0 %v112
  %136 = vmatpush.msra.mxu0 %v111
  %137 = vmatpush.msra.mxu0 %v110
  %138 = vmatpush.msra.mxu0 %v109
  %139 = vmatmul.f32.gmra.mxu0 %v118
  %v140 = vpop.f32.mrf.mxu0
  %v141 = vadd.f32 %v115, %v140
  %142 = vmatmul.f32.gmra.mxu0 %v121
  %v143 = vpop.f32.mrf.mxu0
  %v144 = vadd.f32 %v115, %v143
  %145 = vdwg.mxu0
  %v146 = vlaneseq
  %v147 = vand.u32 %v146, 127
  %vm148 = vcmp.ge.s32.totalorder %v147, 4
  %v149 = vmax.f32 %v141, -6.0
  %v150 = vmax.f32 %v144, -6.0
  %v151 = vmin.f32 %v149, -2.0
  %v152 = vmin.f32 %v150, -2.0
  %v153 = vsel %vm148, %v151, %v141
  %v154 = vsel %vm148, %v152, %v144
  %vm155 = vcmask 64512
  %156 = vst.msk [vmem:[%s7] sm:$0xff] %vm155, %v153
  %157 = vst.msk [vmem:[%s7 + $0x8] sm:$0xff] %vm155, %v154
  // Predicated region
  $region30: #{tpu_custom_call.1} parent=0 // pred_check
    _
  $region31: #{tpu_custom_call.1} parent=0 // pred_check_branch
    %159 = sbr.rel (0) target = $region33
  $region32: #{tpu_custom_call.1} parent=0 // pred_region
    _
  $region33: #{tpu_custom_call.1} parent=0 // pred_fallthru
    _
  // Predicated region
  $region34: #{tpu_custom_call.1} parent=0 // pred_check
    _
  $region35: #{tpu_custom_call.1} parent=0 // pred_check_branch
    %161 = sbr.rel (0) target = $region37
  $region36: #{tpu_custom_call.1} parent=0 // pred_region
    _
  $region37: #{tpu_custom_call.1} parent=0 // pred_fallthru
    _

</llo_original>
